<compile_context>
chip_gen: v5e
topology: v5e:2x2
jax: 0.10.0
libtpu: 0.0.40
codegen_flags: <defaults>
</compile_context>

<pallas_src>
import functools

import jax
import jax.numpy as jnp
from jax.experimental import pallas as pl
from jax.experimental.pallas import tpu as pltpu

_LANE = 128
_NEG = -1e30  # logit for padded expert lanes -> exactly 0 probability after softmax


def _gumbel_gating_kernel(x_ref, w_ref, b_ref, g_ref, out_ref, *,
                          tau, hard, use_approx_recip):
    """Single invocation: linear layer once, gumbel-softmax for all S samples.

    x_ref:   (B, F)       activations
    w_ref:   (Ep, F)      Linear weight, expert axis zero-padded to multiple of 128
    b_ref:   (1, Ep)      bias, padded lanes hold -1e30
    g_ref:   (S, B, Ep)   standard Gumbel(0,1) noise (values in padded lanes unused)
    out_ref: (S, B, Ep)   lane-dense output; caller slices [..., :E]
    """
    # logits = x @ W.T + b, computed ONCE (independent of the sample index).
    # dot_general with both contractions on F avoids a wrapper-side transpose.
    logits = jax.lax.dot_general(
        x_ref[...], w_ref[...],
        dimension_numbers=(((1,), (1,)), ((), ())),
        preferred_element_type=jnp.float32,
    ) + b_ref[...]                                            # (B, Ep)

    # Broadcast over samples, add gumbel noise, temperature-scale; vectorized over S.
    y = (logits[None, :, :] + g_ref[...]) * (1.0 / tau)       # (S, B, Ep)
    y = y - jnp.max(y, axis=-1, keepdims=True)                # padded lanes stay ~ -1e30
    e = jnp.exp(y)                                            # padded lanes -> exactly 0
    denom = jnp.sum(e, axis=-1, keepdims=True)
    if use_approx_recip:
        soft = e * pl.reciprocal(denom, approx=True)          # EUP vrcp slot (TPU only)
    else:
        soft = e / denom

    if hard:
        # Hard one-hot forward value: one_hot(argmax(soft)), tie-break to the first
        # maximal index (torch.max semantics).  Padded lanes have soft == 0 < row_max,
        # so a real expert always wins.
        # TODO(synk): straight-through gradient (grads through `soft`) needs
        # jax.custom_vjp; forward values only here.
        col = jax.lax.broadcasted_iota(jnp.int32, soft.shape, dimension=2)
        row_max = jnp.max(soft, axis=-1, keepdims=True)
        is_max = soft >= row_max
        first = jnp.min(jnp.where(is_max, col, jnp.int32(out_ref.shape[-1])),
                        axis=-1, keepdims=True)
        out = jnp.where(col == first, 1.0, 0.0)
    else:
        out = soft

    out_ref[...] = out.astype(out_ref.dtype)


def gumbel_gating_forward(x, weight, bias, key, *, tau=1.0, num_samples=1, hard=False):
    """Forward pass of GumbelGatingNetwork.

    x:      (B, F) float
    weight: (E, F) float   (PyTorch nn.Linear layout)
    bias:   (E,)   float
    key:    jax.random key for the gumbel noise
    Returns (B, E) if num_samples < 2 else (num_samples, B, E).
    """
    B, F = x.shape
    E = weight.shape[0]
    S = max(int(num_samples), 1)
    Ep = ((E + _LANE - 1) // _LANE) * _LANE   # lane-dense expert axis

    # Parameter prep (would be done once at module init in a real model): pad the
    # expert axis so every in-kernel tensor and the output store are lane-dense.
    w_pad = jnp.zeros((Ep, F), jnp.float32).at[:E, :].set(jnp.asarray(weight, jnp.float32))
    b_pad = jnp.full((1, Ep), _NEG, jnp.float32).at[0, :E].set(jnp.asarray(bias, jnp.float32))

    # Gumbel(0,1) noise drawn with jax.random in the wrapper (the in-kernel TPU
    # hardware PRNG has no interpret/CPU lowering, and adjacent-seed streams
    # can correlate).  One draw covers all S samples.
    gumbel = jax.random.gumbel(key, (S, B, Ep), dtype=jnp.float32)

    use_approx = jax.default_backend() == "tpu"
    kernel = functools.partial(_gumbel_gating_kernel, tau=float(tau),
                               hard=bool(hard), use_approx_recip=use_approx)

    # Whole-array VMEM blocks, single invocation (no grid): the problem is tiny,
    # so per-grid-step overhead would dominate anything a pipeline could hide.
    # TODO(synk): if B grows large, add a B grid axis (tile ~512 rows, marked
    # "parallel") to bound VMEM (v7x: 64 MiB) and expose megacore parallelism.
    out = pl.pallas_call(
        kernel,
        out_shape=jax.ShapeDtypeStruct((S, B, Ep), jnp.float32),
        in_specs=[
            pl.BlockSpec(memory_space=pltpu.MemorySpace.VMEM),  # x
            pl.BlockSpec(memory_space=pltpu.MemorySpace.VMEM),  # weight (padded)
            pl.BlockSpec(memory_space=pltpu.MemorySpace.VMEM),  # bias (padded)
            pl.BlockSpec(memory_space=pltpu.MemorySpace.VMEM),  # gumbel noise
        ],
        out_specs=pl.BlockSpec(memory_space=pltpu.MemorySpace.VMEM),
    )(jnp.asarray(x, jnp.float32), w_pad, b_pad, gumbel)

    out = out[..., :E]            # drop padded expert lanes (free layout plumbing)
    if num_samples < 2:
        out = out[0]
    return out


if __name__ == "__main__":
    # Small, module-consistent shapes: batch=8, in_features=32, num_experts=3.
    B, F, E = 8, 32, 3
    tau = 1.0

    key = jax.random.PRNGKey(0)
    kx, kw, kb, kn1, kn2 = jax.random.split(key, 5)

    x = jax.random.normal(kx, (B, F), dtype=jnp.float32)
    # Deterministic nn.Linear-style init: U(-1/sqrt(F), 1/sqrt(F))
    bound = 1.0 / (F ** 0.5)
    weight = jax.random.uniform(kw, (E, F), minval=-bound, maxval=bound, dtype=jnp.float32)
    bias = jax.random.uniform(kb, (E,), minval=-bound, maxval=bound, dtype=jnp.float32)

    # num_samples=1, soft
    alpha_soft = gumbel_gating_forward(x, weight, bias, kn1, tau=tau,
                                       num_samples=1, hard=False)
    alpha_soft = jax.block_until_ready(alpha_soft)
    assert alpha_soft.shape == (B, E)
    assert bool(jnp.all(jnp.isfinite(alpha_soft)))
    assert bool(jnp.all(alpha_soft >= 0.0))
    # tolerance loosened slightly for the approx-reciprocal softmax denominator
    assert bool(jnp.all(jnp.abs(jnp.sum(alpha_soft, axis=-1) - 1.0) < 1e-3))

    # num_samples=3, hard (straight-through one-hot forward values)
    S = 3
    alpha_hard = gumbel_gating_forward(x, weight, bias, kn2, tau=tau,
                                       num_samples=S, hard=True)
    alpha_hard = jax.block_until_ready(alpha_hard)
    assert alpha_hard.shape == (S, B, E)
    assert bool(jnp.all((alpha_hard == 0.0) | (alpha_hard == 1.0)))
    assert bool(jnp.all(jnp.sum(alpha_hard, axis=-1) == 1.0))

    print("KERNEL_OK")
</pallas_src>

<mosaic_0001>
module attributes {stable_mosaic.version = 11 : i64} {
  func.func @_gumbel_gating_kernel(%arg0: memref<8x32xf32, #tpu.memory_space<vmem>>, %arg1: memref<128x32xf32, #tpu.memory_space<vmem>>, %arg2: memref<1x128xf32, #tpu.memory_space<vmem>>, %arg3: memref<1x8x128xf32, #tpu.memory_space<vmem>>, %arg4: memref<1x8x128xf32, #tpu.memory_space<vmem>>) attributes {dimension_semantics = [], scalar_prefetch = 0 : i64, scratch_operands = 0 : i64, tpu.core_type = #tpu.core_type<tc>} {
    %c0 = arith.constant 0 : index
    %c0_0 = arith.constant 0 : index
    %0 = vector.load %arg0[%c0, %c0_0] : memref<8x32xf32, #tpu.memory_space<vmem>>, vector<8x32xf32>
    %c0_1 = arith.constant 0 : index
    %c0_2 = arith.constant 0 : index
    %1 = vector.load %arg1[%c0_1, %c0_2] : memref<128x32xf32, #tpu.memory_space<vmem>>, vector<128x32xf32>
    %cst = arith.constant dense<0.000000e+00> : vector<8x128xf32>
    %2 = tpu.matmul %0, %1, %cst {dimension_numbers = #tpu.dot_dimension_numbers<[1], [1], [0], [0], [0, 0, 1, 0], [], []>} : vector<8x32xf32>, vector<128x32xf32>, vector<8x128xf32> -> vector<8x128xf32>
    %c0_3 = arith.constant 0 : index
    %c0_4 = arith.constant 0 : index
    %3 = vector.load %arg2[%c0_3, %c0_4] : memref<1x128xf32, #tpu.memory_space<vmem>>, vector<1x128xf32>
    %4 = vector.broadcast %3 : vector<1x128xf32> to vector<8x128xf32>
    %5 = arith.addf %2, %4 : vector<8x128xf32>
    %6 = vector.shape_cast %5 : vector<8x128xf32> to vector<1x8x128xf32>
    %c0_5 = arith.constant 0 : index
    %c0_6 = arith.constant 0 : index
    %c0_7 = arith.constant 0 : index
    %7 = vector.load %arg3[%c0_5, %c0_6, %c0_7] : memref<1x8x128xf32, #tpu.memory_space<vmem>>, vector<1x8x128xf32>
    %8 = arith.addf %6, %7 : vector<1x8x128xf32>
    %cst_8 = arith.constant 1.000000e+00 : f32
    %9 = vector.broadcast %cst_8 : f32 to vector<1x8x128xf32>
    %10 = arith.mulf %8, %9 : vector<1x8x128xf32>
    %cst_9 = arith.constant dense<0xFF800000> : vector<1x8xf32>
    %11 = vector.multi_reduction <maximumf>, %10, %cst_9 [2] : vector<1x8x128xf32> to vector<1x8xf32>
    %12 = vector.shape_cast %11 : vector<1x8xf32> to vector<1x8x1xf32>
    %13 = vector.broadcast %12 : vector<1x8x1xf32> to vector<1x8x128xf32>
    %14 = arith.subf %10, %13 : vector<1x8x128xf32>
    %15 = math.exp %14 : vector<1x8x128xf32>
    %cst_10 = arith.constant dense<0.000000e+00> : vector<1x8xf32>
    %16 = vector.multi_reduction <add>, %15, %cst_10 [2] : vector<1x8x128xf32> to vector<1x8xf32>
    %17 = vector.shape_cast %16 : vector<1x8xf32> to vector<1x8x1xf32>
    %18 = vector.broadcast %17 : vector<1x8x1xf32> to vector<1x8x128xf32>
    %19 = arith.divf %15, %18 : vector<1x8x128xf32>
    %c0_11 = arith.constant 0 : index
    %c0_12 = arith.constant 0 : index
    %c0_13 = arith.constant 0 : index
    %20 = vector.load %arg4[%c0_11, %c0_12, %c0_13] : memref<1x8x128xf32, #tpu.memory_space<vmem>>, vector<1x8x128xf32>
    tpu.vector_store %arg4[%c0_11, %c0_12, %c0_13], %19 {strides = array<i32>} : memref<1x8x128xf32, #tpu.memory_space<vmem>>, vector<1x8x128xf32>,
    return
  }
}

</mosaic_0001>

<llo_original>
// kernel: tpu_custom_call.1
$region0: #{tpu_custom_call.1}
  #allocation0 [shape = 'u32[]', space=smem, size = 0x4, offset = 0x4, fixed_abs, tag = 'smem constant byte address 0x4 - core index']
  #allocation1 [shape = 'u32[72,128]{1,0:T(1,128)}', space=vmem, size = 0x9000, scoped, tag = 'internal scratch']
  %s0 = inlined_call_operand.vmem [shape: f32[8,32], index: 0, kind: input, shape index: {}]
  %s1 = inlined_call_operand.vmem [shape: f32[128,32], index: 1, kind: input, shape index: {}]
  %s2 = inlined_call_operand.vmem [shape: f32[1,128], index: 2, kind: input, shape index: {}]
  %s3 = inlined_call_operand.vmem [shape: f32[1,8,128], index: 3, kind: input, shape index: {}]
  %s4 = inlined_call_operand.hbm [shape: f32[1,8,128], index: 4, kind: output, shape index: {}]
  %s5 = sld [smem:[#allocation0]]
  $region26: #{tpu_custom_call.1} parent=0
    _
  %s7 = ssub.s32 1, %s5
  %s8 = scalar_select 0, %s7, %s5
  $region1: #{tpu_custom_call.1} parent=0
    #allocation2 [shape = 'u8[4096]{0}', space=vmem, size = 0x1000, scoped, tag = 'output window, operand 0, single buffered']
    #allocation3 [shape = 's32[1]{0}', space=sflag, size = 0x4, scoped, tag = 'scoped memory for tpu_custom_call.1']
    %9 = vsyncpa [#allocation3], 0
    // Predicated region
    $region2: #{tpu_custom_call.1} parent=1 // pred_check
      _
    $region3: #{tpu_custom_call.1} parent=1 // pred_check_branch
      %11 = sbr.rel (0) target = $region5
    $region4: #{tpu_custom_call.1} parent=1 // pred_region
      _
    $region5: #{tpu_custom_call.1} parent=1 // pred_fallthru
      _
    // Predicated region
    $region6: #{tpu_custom_call.1} parent=1 // pred_check
      _
    $region7: #{tpu_custom_call.1} parent=1 // pred_check_branch
      %13 = sbr.rel (0) target = $region9
    $region8: #{tpu_custom_call.1} parent=1 // pred_region
      _
    $region9: #{tpu_custom_call.1} parent=1 // pred_fallthru
      _
    // Predicated region
    $region10: #{tpu_custom_call.1} parent=1 // pred_check
      _
    $region11: #{tpu_custom_call.1} parent=1 // pred_check_branch
      %15 = sbr.rel (0) target = $region13
    $region12: #{tpu_custom_call.1} parent=1 // pred_region
      _
    $region13: #{tpu_custom_call.1} parent=1 // pred_fallthru
      _
    // Predicated region
    $region14: #{tpu_custom_call.1} parent=1 // pred_check
      _
    $region15: #{tpu_custom_call.1} parent=1 // pred_check_branch
      %17 = sbr.rel (0) target = $region17
    $region16: #{tpu_custom_call.1} parent=1 // pred_region
      _
    $region17: #{tpu_custom_call.1} parent=1 // pred_fallthru
      _
    %v18 = vld [vmem:[%s0] sm:$0xff]
    %v19 = vld [vmem:[%s1] sm:$0xff]
    %v20 = vld [vmem:[%s1 + $0x8] sm:$0xff]
    %v21 = vld [vmem:[%s1 + $0x10] sm:$0xff]
    %v22 = vld [vmem:[%s1 + $0x18] sm:$0xff]
    %v23 = vld [vmem:[%s1 + $0x20] sm:$0xff]
    %v24 = vld [vmem:[%s1 + $0x28] sm:$0xff]
    %v25 = vld [vmem:[%s1 + $0x30] sm:$0xff]
    %v26 = vld [vmem:[%s1 + $0x38] sm:$0xff]
    %v27 = vld [vmem:[%s1 + $0x40] sm:$0xff]
    %v28 = vld [vmem:[%s1 + $0x48] sm:$0xff]
    %v29 = vld [vmem:[%s1 + $0x50] sm:$0xff]
    %v30 = vld [vmem:[%s1 + $0x58] sm:$0xff]
    %v31 = vld [vmem:[%s1 + $0x60] sm:$0xff]
    %v32 = vld [vmem:[%s1 + $0x68] sm:$0xff]
    %v33 = vld [vmem:[%s1 + $0x70] sm:$0xff]
    %v34 = vld [vmem:[%s1 + $0x78] sm:$0xff]
    %v35 = vld [vmem:[%s2] sm:$0x1]
    %v37 = vperm.slane %v35, 0
    %vm39 = vcmask 261120
    %v41 = vsel %vm39, %v18, 0
    %v44 = vsel %vm39, %v19, 0
    %v47 = vsel %vm39, %v20, 0
    %v50 = vsel %vm39, %v21, 0
    %v53 = vsel %vm39, %v22, 0
    %v56 = vsel %vm39, %v23, 0
    %v59 = vsel %vm39, %v24, 0
    %v62 = vsel %vm39, %v25, 0
    %v65 = vsel %vm39, %v26, 0
    %v68 = vsel %vm39, %v27, 0
    %v71 = vsel %vm39, %v28, 0
    %v74 = vsel %vm39, %v29, 0
    %v77 = vsel %vm39, %v30, 0
    %v80 = vsel %vm39, %v31, 0
    %v83 = vsel %vm39, %v32, 0
    %v86 = vsel %vm39, %v33, 0
    %v89 = vsel %vm39, %v34, 0
    %91 = vmatpush.xpose.msra.mxu0 %v89
    %92 = vmatpush.xpose.msra.mxu0 %v86
    %93 = vmatpush.xpose.msra.mxu0 %v83
    %94 = vmatpush.xpose.msra.mxu0 %v80
    %95 = vmatpush.xpose.msra.mxu0 %v77
    %96 = vmatpush.xpose.msra.mxu0 %v74
    %97 = vmatpush.xpose.msra.mxu0 %v71
    %98 = vmatpush.xpose.msra.mxu0 %v68
    %99 = vmatpush.xpose.msra.mxu0 %v65
    %100 = vmatpush.xpose.msra.mxu0 %v62
    %101 = vmatpush.xpose.msra.mxu0 %v59
    %102 = vmatpush.xpose.msra.mxu0 %v56
    %103 = vmatpush.xpose.msra.mxu0 %v53
    %104 = vmatpush.xpose.msra.mxu0 %v50
    %105 = vmatpush.xpose.msra.mxu0 %v47
    %106 = vmatpush.xpose.msra.mxu0 %v44
    %107 = vmatmul.f32.gmra.mxu0 %v41
    %v108 = vpop.f32.mrf.mxu0
    %v109 = vadd.f32 %v37, %v108
    %110 = vdwg.mxu0
    %v111 = vld [vmem:[%s3] sm:$0xff]
    %v112 = vadd.f32 %v109, %v111
    %113 = vmax.xlane.f32.xlu0 %v112
    %v114 = vpop.xlane.xlu0 %113
    %v115 = vsub.f32 %v112, %v114
    %v116 = vmul.f32 %v115, 1.442695
    %v117 = vpow.pop %v116
    %118 = vadd.xlane.f32.xlu0 %v117
    %v119 = vpop.xlane.xlu0 %118
    %v120 = vrcp.pop %v119
    %v121 = vmul.f32 %v119, %v120
    %v122 = vsub.f32 1.0, %v121
    %v123 = vmul.f32 %v120, %v122
    %v124 = vadd.f32 %v120, %v123
    %vm125 = vweird.f32 %v119
    %vm126 = vweird.f32 %v120
    %vm127 = vmor %vm125, %vm126
    %v128 = vsel %vm127, %v120, %v124
    %v129 = vand.u32 2147483647, %v119
    %vm130 = vcmp.eq.f32.partialorder %v129, 8.507059e+37
    %v131 = vand.u32 %v119, 2147483648
    %v132 = vor.u32 1.1754944e-38, %v131
    %v133 = vsel %vm130, %v132, %v128
    %v134 = vmul.f32 %v117, %v133
    %135 = vst [vmem:[#allocation2] sm:$0xff] %v134
    // Predicated region
    $region18: #{tpu_custom_call.1} parent=1 // pred_check
      _
    $region19: #{tpu_custom_call.1} parent=1 // pred_check_branch
      %137 = sbr.rel (0) target = $region21
    $region20: #{tpu_custom_call.1} parent=1 // pred_region
      %139 = vsyncadd [#allocation3], 0
      %s141 = sshll.u32 [#allocation2], 4
      %s142 = int_to_ptr.vmem [resolvable:$true] %s141
      %s143 = sshll.u32 %s4, 4
      %s144 = int_to_ptr.hbm [resolvable:$true] %s143
      %146 = dma.vmem_to_hbm [thread:$0]  %s142, 128, %s144, [#allocation3]
    $region21: #{tpu_custom_call.1} parent=1 // pred_fallthru
      _
    // Predicated region
    $region22: #{tpu_custom_call.1} parent=1 // pred_check
      _
    $region23: #{tpu_custom_call.1} parent=1 // pred_check_branch
      %148 = sbr.rel (0) target = $region25
    $region24: #{tpu_custom_call.1} parent=1 // pred_region
      %150 = dma.done [#allocation3], 128
    $region25: #{tpu_custom_call.1} parent=1 // pred_fallthru
      _
    %151 = vsyncpa [#allocation3], 1

</llo_original>
